<compile_context>
chip_gen: v7x
topology: tpu7x:2x2x1
jax: 0.10.0
libtpu: 0.0.40
codegen_flags: <defaults>
</compile_context>

<pallas_src>
import functools

import jax
import jax.numpy as jnp
from jax import lax
from jax.experimental import pallas as pl
from jax.experimental.pallas import tpu as pltpu


def _round_up(x, m):
    return ((x + m - 1) // m) * m


def _sdpa_kernel(q_ref, k_ref, v_ref, klen_ref, out_ref, attn_ref, *, inv_temp):
    # q_ref   : (bm, dim)      f32
    # k_ref   : (bm, ts, dim)  f32
    # v_ref   : (bm, ts, dv)   f32
    # klen_ref: (bm, 1)        int32
    bm, ts, _ = k_ref.shape

    q = q_ref[...]
    k = k_ref[...]
    v = v_ref[...]

    # energy[b, t] = sum_d q[b, d] * k[b, t, d]
    # (pure f32 VPU multiply + XLU lane reduce; exact, no bf16 MXU rounding)
    energy = jnp.sum(q[:, None, :] * k, axis=-1)                # (bm, ts)

    # --- temperature-scaled, length-masked softmax over ts ---
    e = energy * inv_temp
    col = lax.broadcasted_iota(jnp.int32, (bm, ts), 1)
    masked = col >= klen_ref[...]                               # (bm, ts), int32 compare
    e = jnp.where(masked, -jnp.inf, e)
    m = jnp.max(e, axis=-1, keepdims=True)
    p = jnp.exp(e - m)
    s = jnp.sum(p, axis=-1, keepdims=True)
    attn = p / s                                                # (bm, ts)

    # out[b, d] = sum_t attn[b, t] * v[b, t, d]
    # (VPU multiply + XLU sublane reduce; exact f32)
    out = jnp.sum(attn[:, :, None] * v, axis=1)                 # (bm, dv)

    out_ref[...] = out.astype(out_ref.dtype)
    attn_ref[...] = attn.astype(attn_ref.dtype)


def scale_dot_attention(q, k, v, k_len, *, num_head, temperature, block_rows=None):
    """Pallas ScaleDotAttention.forward (mask derived from k_len as in compute_mask)."""
    B, ts, dim = k.shape
    dv = v.shape[-1]
    assert q.shape == (B, dim)
    assert B % num_head == 0
    bs = B // num_head

    # Per-row key length, matching mask.view(-1, ts) ordering (batch-major, heads inner).
    klen_rows = jnp.repeat(k_len.astype(jnp.int32), num_head)        # (B,)

    # Row-block size: multiple of 8 (sublane granularity), biggest block whose
    # (double-buffered) K+V tiles stay within a ~8 MiB VMEM budget.
    if block_rows is None:
        bytes_per_row = 4 * ts * (dim + dv)                          # f32 K + V per row
        cap = max(8, ((8 * 1024 * 1024) // max(1, 2 * bytes_per_row)) // 8 * 8)
        block_rows = cap
    bm = min(_round_up(B, 8), _round_up(block_rows, 8))
    B_pad = _round_up(B, bm)
    if B_pad != B:
        pad = B_pad - B
        q = jnp.pad(q, ((0, pad), (0, 0)))
        k = jnp.pad(k, ((0, pad), (0, 0), (0, 0)))
        v = jnp.pad(v, ((0, pad), (0, 0), (0, 0)))
        # Padded rows get k_len = ts so their (discarded) softmax rows stay finite.
        klen_rows = jnp.pad(klen_rows, (0, pad), constant_values=ts)

    # Layout / dtype plumbing stays in the wrapper, not in the kernel.
    q2 = q.astype(jnp.float32)
    k = k.astype(jnp.float32)
    v = v.astype(jnp.float32)
    klen2 = klen_rows.reshape(B_pad, 1)

    kernel = functools.partial(_sdpa_kernel, inv_temp=1.0 / float(temperature))

    out, attn = pl.pallas_call(
        kernel,
        out_shape=(jax.ShapeDtypeStruct((B_pad, dv), jnp.float32),
                   jax.ShapeDtypeStruct((B_pad, ts), jnp.float32)),
        grid=(B_pad // bm,),
        in_specs=[pl.BlockSpec((bm, dim), lambda i: (i, 0)),
                  pl.BlockSpec((bm, ts, dim), lambda i: (i, 0, 0)),
                  pl.BlockSpec((bm, ts, dv), lambda i: (i, 0, 0)),
                  pl.BlockSpec((bm, 1), lambda i: (i, 0))],
        out_specs=(pl.BlockSpec((bm, dv), lambda i: (i, 0)),
                   pl.BlockSpec((bm, ts), lambda i: (i, 0))),
        compiler_params=pltpu.CompilerParams(
            dimension_semantics=("parallel",),       # shards rows across v7x's 2 TCs
            vmem_limit_bytes=32 * 1024 * 1024),      # explicit budget (v7x VMEM = 64 MiB)
    )(q2, k, v, klen2)

    out = out[:B]
    attn = attn[:B].reshape(bs, num_head, ts)
    return out, attn


def _reference(q, k, v, k_len, *, num_head, temperature):
    """Pure-JAX mirror of the PyTorch forward (f32-accurate matmuls)."""
    B, ts, dim = k.shape
    hi = lax.Precision.HIGHEST
    energy = jnp.einsum('bd,btd->bt', q, k, precision=hi)
    e = energy / temperature
    mask = jnp.repeat(jnp.arange(ts)[None, :] >= k_len[:, None], num_head, axis=0)
    e = jnp.where(mask, -jnp.inf, e)
    attn = jax.nn.softmax(e, axis=-1)
    out = jnp.einsum('bt,btd->bd', attn, v, precision=hi)
    return out, attn.reshape(-1, num_head, ts)


if __name__ == "__main__":
    bs, num_head, ts, dim, dv = 2, 4, 16, 32, 32
    temperature = 0.5
    B = bs * num_head

    key = jax.random.PRNGKey(0)
    kq, kk, kv = jax.random.split(key, 3)
    q = jax.random.normal(kq, (B, dim), jnp.float32)
    k = jax.random.normal(kk, (B, ts, dim), jnp.float32)
    v = jax.random.normal(kv, (B, ts, dv), jnp.float32)
    k_len = jnp.array([16, 10], dtype=jnp.int32)

    out, attn = scale_dot_attention(q, k, v, k_len,
                                    num_head=num_head, temperature=temperature)
    jax.block_until_ready((out, attn))

    ref_out, ref_attn = _reference(q, k, v, k_len,
                                   num_head=num_head, temperature=temperature)
    assert out.shape == (B, dv) and attn.shape == (bs, num_head, ts)
    assert jnp.allclose(attn, ref_attn, atol=2e-3, rtol=2e-3), "attention mismatch"
    assert jnp.allclose(out, ref_out, atol=2e-3, rtol=2e-3), "output mismatch"

    print("KERNEL_OK")
</pallas_src>

<mosaic_0001>
module attributes {stable_mosaic.version = 11 : i64} {
  func.func @_sdpa_kernel(%arg0: i32, %arg1: memref<8x32xf32, #tpu.memory_space<vmem>>, %arg2: memref<8x16x32xf32, #tpu.memory_space<vmem>>, %arg3: memref<8x16x32xf32, #tpu.memory_space<vmem>>, %arg4: memref<8x1xi32, #tpu.memory_space<vmem>>, %arg5: memref<8x32xf32, #tpu.memory_space<vmem>>, %arg6: memref<8x16xf32, #tpu.memory_space<vmem>>) attributes {dimension_semantics = [#tpu.dimension_semantics<parallel>], iteration_bounds = array<i64: 1>, scalar_prefetch = 0 : i64, scratch_operands = 0 : i64, tpu.core_type = #tpu.core_type<tc>, window_params = [{transform_indices = @transform_0, window_bounds = array<i64: 8, 32>}, {transform_indices = @transform_1, window_bounds = array<i64: 8, 16, 32>}, {transform_indices = @transform_2, window_bounds = array<i64: 8, 16, 32>}, {transform_indices = @transform_3, window_bounds = array<i64: 8, 1>}, {transform_indices = @transform_4, window_bounds = array<i64: 8, 32>}, {transform_indices = @transform_5, window_bounds = array<i64: 8, 16>}]} {
    %c0 = arith.constant 0 : index
    %c0_0 = arith.constant 0 : index
    %0 = vector.load %arg1[%c0, %c0_0] : memref<8x32xf32, #tpu.memory_space<vmem>>, vector<8x32xf32>
    %c0_1 = arith.constant 0 : index
    %c0_2 = arith.constant 0 : index
    %c0_3 = arith.constant 0 : index
    %1 = vector.load %arg2[%c0_1, %c0_2, %c0_3] : memref<8x16x32xf32, #tpu.memory_space<vmem>>, vector<8x16x32xf32>
    %c0_4 = arith.constant 0 : index
    %c0_5 = arith.constant 0 : index
    %c0_6 = arith.constant 0 : index
    %2 = vector.load %arg3[%c0_4, %c0_5, %c0_6] : memref<8x16x32xf32, #tpu.memory_space<vmem>>, vector<8x16x32xf32>
    %3 = vector.shape_cast %0 : vector<8x32xf32> to vector<8x1x32xf32>
    %4 = vector.broadcast %3 : vector<8x1x32xf32> to vector<8x16x32xf32>
    %5 = arith.mulf %4, %1 : vector<8x16x32xf32>
    %cst = arith.constant dense<0.000000e+00> : vector<8x16xf32>
    %6 = vector.multi_reduction <add>, %5, %cst [2] : vector<8x16x32xf32> to vector<8x16xf32>
    %cst_7 = arith.constant 2.000000e+00 : f32
    %7 = vector.broadcast %cst_7 : f32 to vector<8x16xf32>
    %8 = arith.mulf %6, %7 : vector<8x16xf32>
    %9 = tpu.iota {dimensions = array<i32: 1>} : vector<8x16xi32>
    %c0_8 = arith.constant 0 : index
    %c0_9 = arith.constant 0 : index
    %10 = vector.load %arg4[%c0_8, %c0_9] : memref<8x1xi32, #tpu.memory_space<vmem>>, vector<8x1xi32>
    %11 = vector.broadcast %10 : vector<8x1xi32> to vector<8x16xi32>
    %12 = arith.cmpi sge, %9, %11 : vector<8x16xi32>
    %cst_10 = arith.constant 0xFF800000 : f32
    %13 = vector.broadcast %cst_10 : f32 to vector<8x16xf32>
    %14 = arith.select %12, %13, %8 : vector<8x16xi1>, vector<8x16xf32>
    %cst_11 = arith.constant dense<0xFF800000> : vector<8xf32>
    %15 = vector.multi_reduction <maximumf>, %14, %cst_11 [1] : vector<8x16xf32> to vector<8xf32>
    %16 = vector.shape_cast %15 : vector<8xf32> to vector<8x1xf32>
    %17 = vector.broadcast %16 : vector<8x1xf32> to vector<8x16xf32>
    %18 = arith.subf %14, %17 : vector<8x16xf32>
    %19 = math.exp %18 : vector<8x16xf32>
    %cst_12 = arith.constant dense<0.000000e+00> : vector<8xf32>
    %20 = vector.multi_reduction <add>, %19, %cst_12 [1] : vector<8x16xf32> to vector<8xf32>
    %21 = vector.shape_cast %20 : vector<8xf32> to vector<8x1xf32>
    %22 = vector.broadcast %21 : vector<8x1xf32> to vector<8x16xf32>
    %23 = arith.divf %19, %22 : vector<8x16xf32>
    %24 = vector.shape_cast %23 : vector<8x16xf32> to vector<8x16x1xf32>
    %25 = vector.broadcast %24 : vector<8x16x1xf32> to vector<8x16x32xf32>
    %26 = arith.mulf %25, %2 : vector<8x16x32xf32>
    %cst_13 = arith.constant dense<0.000000e+00> : vector<8x32xf32>
    %27 = vector.multi_reduction <add>, %26, %cst_13 [1] : vector<8x16x32xf32> to vector<8x32xf32>
    %c0_14 = arith.constant 0 : index
    %c0_15 = arith.constant 0 : index
    %28 = vector.load %arg5[%c0_14, %c0_15] : memref<8x32xf32, #tpu.memory_space<vmem>>, vector<8x32xf32>
    tpu.vector_store %arg5[%c0_14, %c0_15], %27 {strides = array<i32>} : memref<8x32xf32, #tpu.memory_space<vmem>>, vector<8x32xf32>,
    %c0_16 = arith.constant 0 : index
    %c0_17 = arith.constant 0 : index
    %29 = vector.load %arg6[%c0_16, %c0_17] : memref<8x16xf32, #tpu.memory_space<vmem>>, vector<8x16xf32>
    tpu.vector_store %arg6[%c0_16, %c0_17], %23 {strides = array<i32>} : memref<8x16xf32, #tpu.memory_space<vmem>>, vector<8x16xf32>,
    return
  }
  func.func @transform_0(%arg0: i32) -> (i32, i32) {
    %c0_i32 = arith.constant 0 : i32
    %c0_i32_0 = arith.constant 0 : i32
    return %arg0, %c0_i32 : i32, i32
  }
  func.func @transform_1(%arg0: i32) -> (i32, i32, i32) {
    %c0_i32 = arith.constant 0 : i32
    %c0_i32_0 = arith.constant 0 : i32
    %c0_i32_1 = arith.constant 0 : i32
    return %arg0, %c0_i32, %c0_i32_0 : i32, i32, i32
  }
  func.func @transform_2(%arg0: i32) -> (i32, i32, i32) {
    %c0_i32 = arith.constant 0 : i32
    %c0_i32_0 = arith.constant 0 : i32
    %c0_i32_1 = arith.constant 0 : i32
    return %arg0, %c0_i32, %c0_i32_0 : i32, i32, i32
  }
  func.func @transform_3(%arg0: i32) -> (i32, i32) {
    %c0_i32 = arith.constant 0 : i32
    %c0_i32_0 = arith.constant 0 : i32
    return %arg0, %c0_i32 : i32, i32
  }
  func.func @transform_4(%arg0: i32) -> (i32, i32) {
    %c0_i32 = arith.constant 0 : i32
    %c0_i32_0 = arith.constant 0 : i32
    return %arg0, %c0_i32 : i32, i32
  }
  func.func @transform_5(%arg0: i32) -> (i32, i32) {
    %c0_i32 = arith.constant 0 : i32
    %c0_i32_0 = arith.constant 0 : i32
    return %arg0, %c0_i32 : i32, i32
  }
}

</mosaic_0001>

<llo_original>
// kernel: tpu_custom_call.1
$region0: #{tpu_custom_call.1}
  #allocation0 [shape = 'u32[]', space=smem, size = 0x4, offset = 0x4, fixed_abs, tag = 'smem constant byte address 0x4 - core index']
  #allocation1 [shape = 'u32[144,128]{1,0:T(1,128)}', space=vmem, size = 0x12000, scoped, tag = 'internal scratch']
  %s0 = inlined_call_operand.vmem [shape: f32[8,32], index: 0, kind: input, shape index: {}]
  %s1 = inlined_call_operand.hbm [shape: f32[8,16,32], index: 1, kind: input, shape index: {}]
  %s2 = inlined_call_operand.hbm [shape: f32[8,16,32], index: 2, kind: input, shape index: {}]
  %s3 = inlined_call_operand.vmem [shape: s32[8,1], index: 3, kind: input, shape index: {}]
  %s4 = inlined_call_operand.hbm [shape: f32[8,32], index: 4, kind: output, shape index: {0}]
  %s5 = inlined_call_operand.hbm [shape: f32[8,16], index: 5, kind: output, shape index: {1}]
  %6 = xla_tuple %s4, %s5
  %s7 = sld [smem:[#allocation0]]
  $region42: #{tpu_custom_call.1} parent=0
    _
  %s9 = ssub.s32 1, %s7
  %s10 = scalar_select 0, %s9, %s7
  $region1: #{tpu_custom_call.1} parent=0
    #allocation2 [shape = 'u8[65536]{0}', space=vmem, size = 0x10000, scoped, tag = 'input window, operand 1, single buffered']
    #allocation3 [shape = 's32[1]{0}', space=sflag, size = 0x4, scoped, tag = 'scoped memory for tpu_custom_call.1']
    #allocation4 [shape = 's32[1]{0}', space=sflag, size = 0x4, scoped, tag = 'scoped memory for tpu_custom_call.1']
    #allocation5 [shape = 'u8[65536]{0}', space=vmem, size = 0x10000, scoped, tag = 'input window, operand 2, single buffered']
    #allocation6 [shape = 's32[1]{0}', space=sflag, size = 0x4, scoped, tag = 'scoped memory for tpu_custom_call.1']
    #allocation7 [shape = 'u8[4096]{0}', space=vmem, size = 0x1000, scoped, tag = 'output window, operand 0, single buffered']
    #allocation8 [shape = 'u8[4096]{0}', space=vmem, size = 0x1000, scoped, tag = 'output window, operand 1, single buffered']
    #allocation9 [shape = 's32[1]{0}', space=sflag, size = 0x4, scoped, tag = 'scoped memory for tpu_custom_call.1']
    %11 = vsyncpa [#allocation3], 0
    %12 = vsyncpa [#allocation6], 0
    %13 = vsyncpa [#allocation4], 0
    %14 = vsyncpa [#allocation9], 0
    // Predicated region
    $region2: #{tpu_custom_call.1} parent=1 // pred_check
      _
    $region3: #{tpu_custom_call.1} parent=1 // pred_check_branch
      %16 = sbr.rel (0) target = $region5
    $region4: #{tpu_custom_call.1} parent=1 // pred_region
      _
    $region5: #{tpu_custom_call.1} parent=1 // pred_fallthru
      _
    // Predicated region
    $region6: #{tpu_custom_call.1} parent=1 // pred_check
      _
    $region7: #{tpu_custom_call.1} parent=1 // pred_check_branch
      %18 = sbr.rel (0) target = $region9
    $region8: #{tpu_custom_call.1} parent=1 // pred_region
      %s20 = ssub.s32 2048, 2048
      %21 = vsyncadd [#allocation3], %s20
      %s22 = sshll.u32 [#allocation2], 4
      %s23 = int_to_ptr.vmem [resolvable:$true] %s22
      %28 = dma.hbm_to_vmem [thread:$0]  %s1, 2048, %s23, [#allocation3], 128, 128, 8
    $region9: #{tpu_custom_call.1} parent=1 // pred_fallthru
      _
    // Predicated region
    $region10: #{tpu_custom_call.1} parent=1 // pred_check
      _
    $region11: #{tpu_custom_call.1} parent=1 // pred_check_branch
      %30 = sbr.rel (0) target = $region13
    $region12: #{tpu_custom_call.1} parent=1 // pred_region
      %s32 = ssub.s32 2048, 2048
      %33 = vsyncadd [#allocation6], %s32
      %s34 = sshll.u32 [#allocation5], 4
      %s35 = int_to_ptr.vmem [resolvable:$true] %s34
      %40 = dma.hbm_to_vmem [thread:$0]  %s2, 2048, %s35, [#allocation6], 128, 128, 8
    $region13: #{tpu_custom_call.1} parent=1 // pred_fallthru
      _
    // Predicated region
    $region14: #{tpu_custom_call.1} parent=1 // pred_check
      _
    $region15: #{tpu_custom_call.1} parent=1 // pred_check_branch
      %42 = sbr.rel (0) target = $region17
    $region16: #{tpu_custom_call.1} parent=1 // pred_region
      _
    $region17: #{tpu_custom_call.1} parent=1 // pred_fallthru
      _
    // Predicated region
    $region18: #{tpu_custom_call.1} parent=1 // pred_check
      _
    $region19: #{tpu_custom_call.1} parent=1 // pred_check_branch
      %44 = sbr.rel (0) target = $region21
    $region20: #{tpu_custom_call.1} parent=1 // pred_region
      %45 = dma.done [#allocation3], 2048
    $region21: #{tpu_custom_call.1} parent=1 // pred_fallthru
      _
    // Predicated region
    $region22: #{tpu_custom_call.1} parent=1 // pred_check
      _
    $region23: #{tpu_custom_call.1} parent=1 // pred_check_branch
      %47 = sbr.rel (0) target = $region25
    $region24: #{tpu_custom_call.1} parent=1 // pred_region
      %48 = dma.done [#allocation6], 2048
    $region25: #{tpu_custom_call.1} parent=1 // pred_fallthru
      _
    %v49 = vld [vmem:[%s0] sm:$0xff]
    %v50 = vld [vmem:[#allocation2] sm:$0xff]
    %v51 = vld [vmem:[#allocation2 + $0x8] sm:$0xff]
    %v52 = vld [vmem:[#allocation2 + $0x10] sm:$0xff]
    %v53 = vld [vmem:[#allocation2 + $0x18] sm:$0xff]
    %v54 = vld [vmem:[#allocation2 + $0x20] sm:$0xff]
    %v55 = vld [vmem:[#allocation2 + $0x28] sm:$0xff]
    %v56 = vld [vmem:[#allocation2 + $0x30] sm:$0xff]
    %v57 = vld [vmem:[#allocation2 + $0x38] sm:$0xff]
    %v58 = vld [vmem:[#allocation2 + $0x40] sm:$0xff]
    %v59 = vld [vmem:[#allocation2 + $0x48] sm:$0xff]
    %v60 = vld [vmem:[#allocation2 + $0x50] sm:$0xff]
    %v61 = vld [vmem:[#allocation2 + $0x58] sm:$0xff]
    %v62 = vld [vmem:[#allocation2 + $0x60] sm:$0xff]
    %v63 = vld [vmem:[#allocation2 + $0x68] sm:$0xff]
    %v64 = vld [vmem:[#allocation2 + $0x70] sm:$0xff]
    %v65 = vld [vmem:[#allocation2 + $0x78] sm:$0xff]
    %v66 = vld [vmem:[#allocation5] sm:$0xff]
    %v67 = vld [vmem:[#allocation5 + $0x8] sm:$0xff]
    %v68 = vld [vmem:[#allocation5 + $0x10] sm:$0xff]
    %v69 = vld [vmem:[#allocation5 + $0x18] sm:$0xff]
    %v70 = vld [vmem:[#allocation5 + $0x20] sm:$0xff]
    %v71 = vld [vmem:[#allocation5 + $0x28] sm:$0xff]
    %v72 = vld [vmem:[#allocation5 + $0x30] sm:$0xff]
    %v73 = vld [vmem:[#allocation5 + $0x38] sm:$0xff]
    %v74 = vld [vmem:[#allocation5 + $0x40] sm:$0xff]
    %v75 = vld [vmem:[#allocation5 + $0x48] sm:$0xff]
    %v76 = vld [vmem:[#allocation5 + $0x50] sm:$0xff]
    %v77 = vld [vmem:[#allocation5 + $0x58] sm:$0xff]
    %v78 = vld [vmem:[#allocation5 + $0x60] sm:$0xff]
    %v79 = vld [vmem:[#allocation5 + $0x68] sm:$0xff]
    %v80 = vld [vmem:[#allocation5 + $0x70] sm:$0xff]
    %v81 = vld [vmem:[#allocation5 + $0x78] sm:$0xff]
    %v83 = vcombine.high %v49, %v49
    %v85 = vunpack.c.l.s4 1966171168
    %v86 = vunpack.c.0.s8 %v85
    %v87 = vlaneseq
    %v88 = vshrl.u32 %v87, 7
    %v89 = vsub.s32 %v86, %v88
    %v90 = vrot.slane %v49, %v89
    %v92 = vunpack.c.l.s4 1966171168
    %v93 = vunpack.c.0.s8 %v92
    %v94 = vlaneseq
    %v95 = vshrl.u32 %v94, 7
    %v96 = vsub.s32 %v93, %v95
    %v97 = vrot.slane %v83, %v96
    %v98 = vcombine.high %v90, %v90
    %v99 = vcombine.high %v97, %v97
    %v101 = vunpack.c.l.s4 1966171168
    %v102 = vunpack.c.0.s8 %v101
    %v103 = vlaneseq
    %v104 = vshrl.u32 %v103, 7
    %v105 = vsub.s32 %v102, %v104
    %v106 = vrot.slane %v90, %v105
    %v108 = vunpack.c.l.s4 1966171168
    %v109 = vunpack.c.0.s8 %v108
    %v110 = vlaneseq
    %v111 = vshrl.u32 %v110, 7
    %v112 = vsub.s32 %v109, %v111
    %v113 = vrot.slane %v97, %v112
    %v115 = vunpack.c.l.s4 1966171168
    %v116 = vunpack.c.0.s8 %v115
    %v117 = vlaneseq
    %v118 = vshrl.u32 %v117, 7
    %v119 = vsub.s32 %v116, %v118
    %v120 = vrot.slane %v98, %v119
    %v122 = vunpack.c.l.s4 1966171168
    %v123 = vunpack.c.0.s8 %v122
    %v124 = vlaneseq
    %v125 = vshrl.u32 %v124, 7
    %v126 = vsub.s32 %v123, %v125
    %v127 = vrot.slane %v99, %v126
    %v128 = vcombine.high %v106, %v106
    %v129 = vcombine.high %v113, %v113
    %v130 = vcombine.high %v120, %v120
    %v131 = vcombine.high %v127, %v127
    %v132 = vlaneseq
    %v133 = vshrl.u32 %v132, 7
    %v134 = vsub.s32 0, %v133
    %v135 = vrot.slane %v106, %v134
    %v136 = vlaneseq
    %v137 = vshrl.u32 %v136, 7
    %v138 = vsub.s32 0, %v137
    %v139 = vrot.slane %v120, %v138
    %v140 = vlaneseq
    %v141 = vshrl.u32 %v140, 7
    %v142 = vsub.s32 0, %v141
    %v143 = vrot.slane %v128, %v142
    %v144 = vlaneseq
    %v145 = vshrl.u32 %v144, 7
    %v146 = vsub.s32 0, %v145
    %v147 = vrot.slane %v130, %v146
    %v148 = vlaneseq
    %v149 = vshrl.u32 %v148, 7
    %v150 = vsub.s32 0, %v149
    %v151 = vrot.slane %v113, %v150
    %v152 = vlaneseq
    %v153 = vshrl.u32 %v152, 7
    %v154 = vsub.s32 0, %v153
    %v155 = vrot.slane %v127, %v154
    %v156 = vlaneseq
    %v157 = vshrl.u32 %v156, 7
    %v158 = vsub.s32 0, %v157
    %v159 = vrot.slane %v129, %v158
    %v160 = vlaneseq
    %v161 = vshrl.u32 %v160, 7
    %v162 = vsub.s32 0, %v161
    %v163 = vrot.slane %v131, %v162
    %v172 = vmul.f32 %v135, %v50
    %v173 = vmul.f32 %v135, %v51
    %v174 = vmul.f32 %v139, %v52
    %v175 = vmul.f32 %v139, %v53
    %v176 = vmul.f32 %v143, %v54
    %v177 = vmul.f32 %v143, %v55
    %v178 = vmul.f32 %v147, %v56
    %v179 = vmul.f32 %v147, %v57
    %v180 = vmul.f32 %v151, %v58
    %v181 = vmul.f32 %v151, %v59
    %v182 = vmul.f32 %v155, %v60
    %v183 = vmul.f32 %v155, %v61
    %v184 = vmul.f32 %v159, %v62
    %v185 = vmul.f32 %v159, %v63
    %v186 = vmul.f32 %v163, %v64
    %v187 = vmul.f32 %v163, %v65
    %vm188 = vcmask 261120
    %v189 = vsel %vm188, %v172, 0.0
    %190 = vadd.xlane.f32.xlu0 %v189
    %v191 = vpop.xlane.xlu0 %190
    %v192 = vsel %vm188, %v173, 0.0
    %193 = vadd.xlane.f32.xlu0 %v192
    %v194 = vpop.xlane.xlu0 %193
    %v195 = vsel %vm188, %v174, 0.0
    %196 = vadd.xlane.f32.xlu0 %v195
    %v197 = vpop.xlane.xlu0 %196
    %v198 = vsel %vm188, %v175, 0.0
    %199 = vadd.xlane.f32.xlu0 %v198
    %v200 = vpop.xlane.xlu0 %199
    %v201 = vsel %vm188, %v176, 0.0
    %202 = vadd.xlane.f32.xlu0 %v201
    %v203 = vpop.xlane.xlu0 %202
    %v204 = vsel %vm188, %v177, 0.0
    %205 = vadd.xlane.f32.xlu0 %v204
    %v206 = vpop.xlane.xlu0 %205
    %v207 = vsel %vm188, %v178, 0.0
    %208 = vadd.xlane.f32.xlu0 %v207
    %v209 = vpop.xlane.xlu0 %208
    %v210 = vsel %vm188, %v179, 0.0
    %211 = vadd.xlane.f32.xlu0 %v210
    %v212 = vpop.xlane.xlu0 %211
    %v213 = vsel %vm188, %v180, 0.0
    %214 = vadd.xlane.f32.xlu0 %v213
    %v215 = vpop.xlane.xlu0 %214
    %v216 = vsel %vm188, %v181, 0.0
    %217 = vadd.xlane.f32.xlu0 %v216
    %v218 = vpop.xlane.xlu0 %217
    %v219 = vsel %vm188, %v182, 0.0
    %220 = vadd.xlane.f32.xlu0 %v219
    %v221 = vpop.xlane.xlu0 %220
    %v222 = vsel %vm188, %v183, 0.0
    %223 = vadd.xlane.f32.xlu0 %v222
    %v224 = vpop.xlane.xlu0 %223
    %v225 = vsel %vm188, %v184, 0.0
    %226 = vadd.xlane.f32.xlu0 %v225
    %v227 = vpop.xlane.xlu0 %226
    %v228 = vsel %vm188, %v185, 0.0
    %229 = vadd.xlane.f32.xlu0 %v228
    %v230 = vpop.xlane.xlu0 %229
    %v231 = vsel %vm188, %v186, 0.0
    %232 = vadd.xlane.f32.xlu0 %v231
    %v233 = vpop.xlane.xlu0 %232
    %v234 = vsel %vm188, %v187, 0.0
    %235 = vadd.xlane.f32.xlu0 %v234
    %v236 = vpop.xlane.xlu0 %235
    %v237 = vmul.f32 %v191, 2.0
    %v238 = vmul.f32 %v194, 2.0
    %v239 = vmul.f32 %v197, 2.0
    %v240 = vmul.f32 %v200, 2.0
    %v241 = vmul.f32 %v203, 2.0
    %v242 = vmul.f32 %v206, 2.0
    %v243 = vmul.f32 %v209, 2.0
    %v244 = vmul.f32 %v212, 2.0
    %v245 = vmul.f32 %v215, 2.0
    %v246 = vmul.f32 %v218, 2.0
    %v247 = vmul.f32 %v221, 2.0
    %v248 = vmul.f32 %v224, 2.0
    %v249 = vmul.f32 %v227, 2.0
    %v250 = vmul.f32 %v230, 2.0
    %v251 = vmul.f32 %v233, 2.0
    %v252 = vmul.f32 %v236, 2.0
    %v253 = vlaneseq
    %v254 = vand.u32 %v253, 127
    %v255 = vld [vmem:[%s3] sm:$0xff]
    %256 = vset.pattern.permute.xlu0 0
    %257 = vperm.xlu0 %256, %v255
    %v258 = vpop.permute.xlu0 %257
    %vm259 = vcmp.ge.s32.totalorder %v254, %v258
    %v276 = vlaneseq
    %v277 = vshrl.u32 %v276, 7
    %v278 = vsub.s32 %v254, %v277
    %v279 = vrot.slane %v237, %v278
    %v280 = vadd.s32 %v254, 4294967288
    %v281 = vlaneseq
    %v282 = vshrl.u32 %v281, 7
    %v283 = vsub.s32 %v280, %v282
    %v284 = vrot.slane %v238, %v283
    %vm285 = vcmask 130112
    %v286 = vsel %vm285, %v284, %v279
    %v287 = vlaneseq
    %v288 = vshrl.u32 %v287, 7
    %v289 = vsub.s32 %v254, %v288
    %v290 = vrot.slane %v239, %v289
    %v291 = vlaneseq
    %v292 = vshrl.u32 %v291, 7
    %v293 = vsub.s32 %v280, %v292
    %v294 = vrot.slane %v240, %v293
    %v295 = vsel %vm285, %v294, %v290
    %v296 = vlaneseq
    %v297 = vshrl.u32 %v296, 7
    %v298 = vsub.s32 %v254, %v297
    %v299 = vrot.slane %v241, %v298
    %v300 = vlaneseq
    %v301 = vshrl.u32 %v300, 7
    %v302 = vsub.s32 %v280, %v301
    %v303 = vrot.slane %v242, %v302
    %v304 = vsel %vm285, %v303, %v299
    %v305 = vlaneseq
    %v306 = vshrl.u32 %v305, 7
    %v307 = vsub.s32 %v254, %v306
    %v308 = vrot.slane %v243, %v307
    %v309 = vlaneseq
    %v310 = vshrl.u32 %v309, 7
    %v311 = vsub.s32 %v280, %v310
    %v312 = vrot.slane %v244, %v311
    %v313 = vsel %vm285, %v312, %v308
    %v314 = vlaneseq
    %v315 = vshrl.u32 %v314, 7
    %v316 = vsub.s32 %v254, %v315
    %v317 = vrot.slane %v245, %v316
    %v318 = vlaneseq
    %v319 = vshrl.u32 %v318, 7
    %v320 = vsub.s32 %v280, %v319
    %v321 = vrot.slane %v246, %v320
    %v322 = vsel %vm285, %v321, %v317
    %v323 = vlaneseq
    %v324 = vshrl.u32 %v323, 7
    %v325 = vsub.s32 %v254, %v324
    %v326 = vrot.slane %v247, %v325
    %v327 = vlaneseq
    %v328 = vshrl.u32 %v327, 7
    %v329 = vsub.s32 %v280, %v328
    %v330 = vrot.slane %v248, %v329
    %v331 = vsel %vm285, %v330, %v326
    %v332 = vlaneseq
    %v333 = vshrl.u32 %v332, 7
    %v334 = vsub.s32 %v254, %v333
    %v335 = vrot.slane %v249, %v334
    %v336 = vlaneseq
    %v337 = vshrl.u32 %v336, 7
    %v338 = vsub.s32 %v280, %v337
    %v339 = vrot.slane %v250, %v338
    %v340 = vsel %vm285, %v339, %v335
    %v341 = vlaneseq
    %v342 = vshrl.u32 %v341, 7
    %v343 = vsub.s32 %v254, %v342
    %v344 = vrot.slane %v251, %v343
    %v345 = vlaneseq
    %v346 = vshrl.u32 %v345, 7
    %v347 = vsub.s32 %v280, %v346
    %v348 = vrot.slane %v252, %v347
    %v349 = vsel %vm285, %v348, %v344
    %vm350 = vcmask 1041409
    %v351 = vsel %vm350, %v295, %v286
    %vm352 = vcmask 1042434
    %v353 = vsel %vm352, %v304, %v351
    %vm354 = vcmask 1043459
    %v355 = vsel %vm354, %v313, %v353
    %vm356 = vcmask 1044484
    %v357 = vsel %vm356, %v322, %v355
    %vm358 = vcmask 1045509
    %v359 = vsel %vm358, %v331, %v357
    %vm360 = vcmask 1046534
    %v361 = vsel %vm360, %v340, %v359
    %vm362 = vcmask 1047559
    %v363 = vsel %vm362, %v349, %v361
    %v365 = vsel %vm259, -inf, %v363
    %vm366 = vcmask 130048
    %v367 = vsel %vm366, %v365, -inf
    %368 = vmax.xlane.f32.xlu0 %v367
    %v369 = vpop.xlane.xlu0 %368
    %v370 = vsub.f32 %v365, %v369
    %v371 = vmul.f32 %v370, 1.442695
    %v372 = vpow.pop %v371
    %v373 = vsel %vm366, %v372, 0.0
    %374 = vadd.xlane.f32.xlu0 %v373
    %v375 = vpop.xlane.xlu0 %374
    %v376 = vrcp.pop %v375
    %v377 = vmul.f32 %v372, %v376
    %v378 = vlaneseq
    %v379 = vshrl.u32 %v378, 7
    %v380 = vsub.s32 0, %v379
    %v381 = vrot.slane %v377, %v380
    %383 = vbcast.lane.b32.xlu0 %v381, 256
    %v384 = vpop.permute.xlu0 %383
    %s386 = sor.u32 256, 8
    %387 = vbcast.lane.b32.xlu0 %v381, %s386
    %v388 = vpop.permute.xlu0 %387
    %v389 = vlaneseq
    %v390 = vshrl.u32 %v389, 7
    %v391 = vsub.s32 1, %v390
    %v392 = vrot.slane %v377, %v391
    %394 = vbcast.lane.b32.xlu0 %v392, 256
    %v395 = vpop.permute.xlu0 %394
    %s397 = sor.u32 256, 8
    %398 = vbcast.lane.b32.xlu0 %v392, %s397
    %v399 = vpop.permute.xlu0 %398
    %v400 = vlaneseq
    %v401 = vshrl.u32 %v400, 7
    %v402 = vsub.s32 2, %v401
    %v403 = vrot.slane %v377, %v402
    %405 = vbcast.lane.b32.xlu0 %v403, 256
    %v406 = vpop.permute.xlu0 %405
    %s408 = sor.u32 256, 8
    %409 = vbcast.lane.b32.xlu0 %v403, %s408
    %v410 = vpop.permute.xlu0 %409
    %v411 = vlaneseq
    %v412 = vshrl.u32 %v411, 7
    %v413 = vsub.s32 3, %v412
    %v414 = vrot.slane %v377, %v413
    %416 = vbcast.lane.b32.xlu0 %v414, 256
    %v417 = vpop.permute.xlu0 %416
    %s419 = sor.u32 256, 8
    %420 = vbcast.lane.b32.xlu0 %v414, %s419
    %v421 = vpop.permute.xlu0 %420
    %v422 = vlaneseq
    %v423 = vshrl.u32 %v422, 7
    %v424 = vsub.s32 4, %v423
    %v425 = vrot.slane %v377, %v424
    %427 = vbcast.lane.b32.xlu0 %v425, 256
    %v428 = vpop.permute.xlu0 %427
    %s430 = sor.u32 256, 8
    %431 = vbcast.lane.b32.xlu0 %v425, %s430
    %v432 = vpop.permute.xlu0 %431
    %v433 = vlaneseq
    %v434 = vshrl.u32 %v433, 7
    %v435 = vsub.s32 5, %v434
    %v436 = vrot.slane %v377, %v435
    %438 = vbcast.lane.b32.xlu0 %v436, 256
    %v439 = vpop.permute.xlu0 %438
    %s441 = sor.u32 256, 8
    %442 = vbcast.lane.b32.xlu0 %v436, %s441
    %v443 = vpop.permute.xlu0 %442
    %v444 = vlaneseq
    %v445 = vshrl.u32 %v444, 7
    %v446 = vsub.s32 6, %v445
    %v447 = vrot.slane %v377, %v446
    %449 = vbcast.lane.b32.xlu0 %v447, 256
    %v450 = vpop.permute.xlu0 %449
    %s452 = sor.u32 256, 8
    %453 = vbcast.lane.b32.xlu0 %v447, %s452
    %v454 = vpop.permute.xlu0 %453
    %v455 = vlaneseq
    %v456 = vshrl.u32 %v455, 7
    %v457 = vsub.s32 7, %v456
    %v458 = vrot.slane %v377, %v457
    %460 = vbcast.lane.b32.xlu0 %v458, 256
    %v461 = vpop.permute.xlu0 %460
    %s463 = sor.u32 256, 8
    %464 = vbcast.lane.b32.xlu0 %v458, %s463
    %v465 = vpop.permute.xlu0 %464
    %v466 = vmul.f32 %v384, %v66
    %v467 = vmul.f32 %v388, %v67
    %v468 = vmul.f32 %v395, %v68
    %v469 = vmul.f32 %v399, %v69
    %v470 = vmul.f32 %v406, %v70
    %v471 = vmul.f32 %v410, %v71
    %v472 = vmul.f32 %v417, %v72
    %v473 = vmul.f32 %v421, %v73
    %v474 = vmul.f32 %v428, %v74
    %v475 = vmul.f32 %v432, %v75
    %v476 = vmul.f32 %v439, %v76
    %v477 = vmul.f32 %v443, %v77
    %v478 = vmul.f32 %v450, %v78
    %v479 = vmul.f32 %v454, %v79
    %v480 = vmul.f32 %v461, %v80
    %v481 = vmul.f32 %v465, %v81
    %v482 = vsel %vm188, %v466, 0.0
    %v483 = vsel %vm188, %v467, 0.0
    %v484 = vadd.f32 %v482, %v483
    %v485 = vrot.slane %v484, 4
    %v486 = vadd.f32 %v484, %v485
    %v487 = vrot.slane %v486, 2
    %v488 = vadd.f32 %v486, %v487
    %v489 = vrot.slane %v488, 1
    %v490 = vadd.f32 %v488, %v489
    %v491 = vsel %vm188, %v468, 0.0
    %v492 = vsel %vm188, %v469, 0.0
    %v493 = vadd.f32 %v491, %v492
    %v494 = vrot.slane %v493, 4
    %v495 = vadd.f32 %v493, %v494
    %v496 = vrot.slane %v495, 2
    %v497 = vadd.f32 %v495, %v496
    %v498 = vrot.slane %v497, 1
    %v499 = vadd.f32 %v497, %v498
    %v500 = vsel %vm188, %v470, 0.0
    %v501 = vsel %vm188, %v471, 0.0
    %v502 = vadd.f32 %v500, %v501
    %v503 = vrot.slane %v502, 4
    %v504 = vadd.f32 %v502, %v503
    %v505 = vrot.slane %v504, 2
    %v506 = vadd.f32 %v504, %v505
    %v507 = vrot.slane %v506, 1
    %v508 = vadd.f32 %v506, %v507
    %v509 = vsel %vm188, %v472, 0.0
    %v510 = vsel %vm188, %v473, 0.0
    %v511 = vadd.f32 %v509, %v510
    %v512 = vrot.slane %v511, 4
    %v513 = vadd.f32 %v511, %v512
    %v514 = vrot.slane %v513, 2
    %v515 = vadd.f32 %v513, %v514
    %v516 = vrot.slane %v515, 1
    %v517 = vadd.f32 %v515, %v516
    %v518 = vsel %vm188, %v474, 0.0
    %v519 = vsel %vm188, %v475, 0.0
    %v520 = vadd.f32 %v518, %v519
    %v521 = vrot.slane %v520, 4
    %v522 = vadd.f32 %v520, %v521
    %v523 = vrot.slane %v522, 2
    %v524 = vadd.f32 %v522, %v523
    %v525 = vrot.slane %v524, 1
    %v526 = vadd.f32 %v524, %v525
    %v527 = vsel %vm188, %v476, 0.0
    %v528 = vsel %vm188, %v477, 0.0
    %v529 = vadd.f32 %v527, %v528
    %v530 = vrot.slane %v529, 4
    %v531 = vadd.f32 %v529, %v530
    %v532 = vrot.slane %v531, 2
    %v533 = vadd.f32 %v531, %v532
    %v534 = vrot.slane %v533, 1
    %v535 = vadd.f32 %v533, %v534
    %v536 = vsel %vm188, %v478, 0.0
    %v537 = vsel %vm188, %v479, 0.0
    %v538 = vadd.f32 %v536, %v537
    %v539 = vrot.slane %v538, 4
    %v540 = vadd.f32 %v538, %v539
    %v541 = vrot.slane %v540, 2
    %v542 = vadd.f32 %v540, %v541
    %v543 = vrot.slane %v542, 1
    %v544 = vadd.f32 %v542, %v543
    %v545 = vsel %vm188, %v480, 0.0
    %v546 = vsel %vm188, %v481, 0.0
    %v547 = vadd.f32 %v545, %v546
    %v548 = vrot.slane %v547, 4
    %v549 = vadd.f32 %v547, %v548
    %v550 = vrot.slane %v549, 2
    %v551 = vadd.f32 %v549, %v550
    %v552 = vrot.slane %v551, 1
    %v553 = vadd.f32 %v551, %v552
    %v562 = vsel %vm350, %v499, %v490
    %v563 = vsel %vm352, %v508, %v562
    %v564 = vsel %vm354, %v517, %v563
    %v565 = vsel %vm356, %v526, %v564
    %v566 = vsel %vm358, %v535, %v565
    %v567 = vsel %vm360, %v544, %v566
    %v568 = vsel %vm362, %v553, %v567
    %570 = vst.msk [vmem:[#allocation7] sm:$0xff] %vm188, %v568
    %571 = vst.msk [vmem:[#allocation8] sm:$0xff] %vm366, %v377
    // Predicated region
    $region26: #{tpu_custom_call.1} parent=1 // pred_check
      _
    $region27: #{tpu_custom_call.1} parent=1 // pred_check_branch
      %573 = sbr.rel (0) target = $region29
    $region28: #{tpu_custom_call.1} parent=1 // pred_region
      %s575 = ssub.s32 128, 128
      %576 = vsyncadd [#allocation4], %s575
      %s578 = sshll.u32 [#allocation7], 4
      %s579 = int_to_ptr.vmem [resolvable:$true] %s578
      %581 = dma.vmem_to_hbm [thread:$0]  %s579, 128, %s4, [#allocation4]
    $region29: #{tpu_custom_call.1} parent=1 // pred_fallthru
      _
    // Predicated region
    $region30: #{tpu_custom_call.1} parent=1 // pred_check
      _
    $region31: #{tpu_custom_call.1} parent=1 // pred_check_branch
      %583 = sbr.rel (0) target = $region33
    $region32: #{tpu_custom_call.1} parent=1 // pred_region
      %s585 = ssub.s32 128, 128
      %586 = vsyncadd [#allocation9], %s585
      %s588 = sshll.u32 [#allocation8], 4
      %s589 = int_to_ptr.vmem [resolvable:$true] %s588
      %591 = dma.vmem_to_hbm [thread:$0]  %s589, 128, %s5, [#allocation9]
    $region33: #{tpu_custom_call.1} parent=1 // pred_fallthru
      _
    // Predicated region
    $region34: #{tpu_custom_call.1} parent=1 // pred_check
      _
    $region35: #{tpu_custom_call.1} parent=1 // pred_check_branch
      %593 = sbr.rel (0) target = $region37
    $region36: #{tpu_custom_call.1} parent=1 // pred_region
      %594 = dma.done [#allocation4], 128
    $region37: #{tpu_custom_call.1} parent=1 // pred_fallthru
      _
    // Predicated region
    $region38: #{tpu_custom_call.1} parent=1 // pred_check
      _
    $region39: #{tpu_custom_call.1} parent=1 // pred_check_branch
      %596 = sbr.rel (0) target = $region41
    $region40: #{tpu_custom_call.1} parent=1 // pred_region
      %597 = dma.done [#allocation9], 128
    $region41: #{tpu_custom_call.1} parent=1 // pred_fallthru
      _
    %598 = vsyncpa [#allocation3], 1
    %599 = vsyncpa [#allocation6], 1
    %600 = vsyncpa [#allocation4], 1
    %601 = vsyncpa [#allocation9], 1

</llo_original>
